<compile_context>
chip_gen: v5e
topology: v5e:2x2
jax: 0.10.0
libtpu: 0.0.40
codegen_flags: <defaults>
</compile_context>

<pallas_src>
import jax
import jax.numpy as jnp
from jax.experimental import pallas as pl
from jax.experimental.pallas import tpu as pltpu

# ----------------------------- sizes ----------------------------------------
B = 8            # batch
WIDE_DIM = 16    # wide feature width
DENSE_DIM = 32   # deep dense feature width
H1 = 32          # deep_dense hidden
DD_OUT = 16      # deep_dense.output_dim
HEAD_H = 32      # head_layers_dims = [HEAD_H]
OUT = 2          # output_dim

NEG_SLOPE = 0.01  # torch.nn.LeakyReLU default

# ----------------------- packed parameter layout ------------------------------
# One f32 (PROWS, PCOLS) buffer -> a single parameter DMA per pallas_call, kept
# VMEM-resident across batch tiles via a constant index_map.  All row offsets
# are multiples of 8 (sublane-aligned) so the static slices below never cross
# (8,128) tile boundaries.
PCOLS = 32                          # packed param column width (max hidden dim)
R_W1, R_B1 = 0, 32                  # deep_dense layer 1: (32,32) weight, (1,32) bias
R_W2, R_B2 = 40, 72                 # deep_dense layer 2: (32,16) weight, (1,16) bias
R_WH, R_BH = 80, 96                 # head dense_layer   : (16,32) weight, (1,32) bias
R_WW = 104                          # wide               : (16, 2) weight
R_WO = 120                          # head_out           : (32, 2) weight
R_BF = 152                          # fused bias b_wide + b_out : (1, 2)
PROWS = 160


def _leaky_relu(x):
    return jnp.where(x > 0, x, NEG_SLOPE * x)


# ----------------------------- kernel ---------------------------------------
def wide_deep_kernel(xw_ref, xd_ref, p_ref, out_ref):
    f32 = jnp.float32

    xw = xw_ref[...]                                 # (TM, WIDE_DIM)
    xd = xd_ref[...]                                 # (TM, DENSE_DIM)

    # Static, sublane-aligned slices of the packed parameter buffer.
    w1 = p_ref[R_W1:R_W1 + DENSE_DIM, 0:H1]          # (DENSE_DIM, H1)
    b1 = p_ref[R_B1:R_B1 + 1,         0:H1]          # (1, H1)
    w2 = p_ref[R_W2:R_W2 + H1,        0:DD_OUT]      # (H1, DD_OUT)
    b2 = p_ref[R_B2:R_B2 + 1,         0:DD_OUT]      # (1, DD_OUT)
    wh = p_ref[R_WH:R_WH + DD_OUT,    0:HEAD_H]      # (DD_OUT, HEAD_H)
    bh = p_ref[R_BH:R_BH + 1,         0:HEAD_H]      # (1, HEAD_H)
    ww = p_ref[R_WW:R_WW + WIDE_DIM,  0:OUT]         # (WIDE_DIM, OUT)
    wo = p_ref[R_WO:R_WO + HEAD_H,    0:OUT]         # (HEAD_H, OUT)
    bf = p_ref[R_BF:R_BF + 1,         0:OUT]         # (1, OUT) = b_wide + b_out

    # deep_dense branch: (Linear + LeakyReLU) x 2
    h1 = _leaky_relu(jnp.dot(xd, w1, preferred_element_type=f32) + b1)
    dd = _leaky_relu(jnp.dot(h1, w2, preferred_element_type=f32) + b2)

    # deep_head dense_layer (Linear + LeakyReLU + Dropout(p=0.0) == identity)
    hh = _leaky_relu(jnp.dot(dd, wh, preferred_element_type=f32) + bh)

    # wide(X_wide) is independent of the deep chain -> issues into the idle MXU.
    wide = jnp.dot(xw, ww, preferred_element_type=f32)            # (TM, OUT)

    # out.add_(head_out(hh)) with the two biases pre-summed host-side.
    logits = wide + jnp.dot(hh, wo, preferred_element_type=f32) + bf

    # softmax(dim=1), numerically stabilized, EXACT reciprocal.
    m = jnp.max(logits, axis=1, keepdims=True)
    e = jnp.exp(logits - m)
    denom = jnp.sum(e, axis=1, keepdims=True)
    out_ref[...] = (e / denom).astype(out_ref.dtype)


# ----------------------------- packing ---------------------------------------
def pack_params(p):
    """Pack all weights/biases into one f32 (PROWS, PCOLS) buffer.
    Run ONCE at weight-load time (host side), never in the per-step path."""
    buf = jnp.zeros((PROWS, PCOLS), jnp.float32)
    buf = buf.at[R_W1:R_W1 + DENSE_DIM, :H1].set(p["w_d1"])
    buf = buf.at[R_B1:R_B1 + 1,         :H1].set(p["b_d1"])
    buf = buf.at[R_W2:R_W2 + H1,        :DD_OUT].set(p["w_d2"])
    buf = buf.at[R_B2:R_B2 + 1,         :DD_OUT].set(p["b_d2"])
    buf = buf.at[R_WH:R_WH + DD_OUT,    :HEAD_H].set(p["w_h"])
    buf = buf.at[R_BH:R_BH + 1,         :HEAD_H].set(p["b_h"])
    buf = buf.at[R_WW:R_WW + WIDE_DIM,  :OUT].set(p["w_wide"])
    buf = buf.at[R_WO:R_WO + HEAD_H,    :OUT].set(p["w_out"])
    buf = buf.at[R_BF:R_BF + 1,         :OUT].set(p["b_wide"] + p["b_out"])
    return buf


# ----------------------------- wrapper ---------------------------------------
def wide_deep_forward(x_wide, x_deep_dense, param_buf, *, block_m=None):
    btot = x_wide.shape[0]
    if block_m is None:
        block_m = min(btot, 256)           # 256-row MXU fill on v6e/v7x at scale
    if btot % block_m != 0:
        block_m = btot                     # keep the demo exact (no ragged tile)
    grid = (pl.cdiv(btot, block_m),)

    return pl.pallas_call(
        wide_deep_kernel,
        out_shape=jax.ShapeDtypeStruct((btot, OUT), jnp.float32),
        grid=grid,
        in_specs=[
            pl.BlockSpec((block_m, WIDE_DIM), lambda i: (i, 0)),
            pl.BlockSpec((block_m, DENSE_DIM), lambda i: (i, 0)),
            # constant index_map: params DMA'd once, stay VMEM-resident
            pl.BlockSpec((PROWS, PCOLS), lambda i: (0, 0)),
        ],
        out_specs=pl.BlockSpec((block_m, OUT), lambda i: (i, 0)),
        compiler_params=pltpu.CompilerParams(
            dimension_semantics=("parallel",)),
    )(x_wide, x_deep_dense, param_buf)


wide_deep_forward_jit = jax.jit(wide_deep_forward)


# --------------------------- reference (plain JAX) ----------------------------
def reference_forward(x_wide, x_deep_dense, p):
    wide = x_wide @ p["w_wide"] + p["b_wide"]
    h1 = _leaky_relu(x_deep_dense @ p["w_d1"] + p["b_d1"])
    dd = _leaky_relu(h1 @ p["w_d2"] + p["b_d2"])
    hh = _leaky_relu(dd @ p["w_h"] + p["b_h"])
    logits = wide + (hh @ p["w_out"] + p["b_out"])
    return jax.nn.softmax(logits, axis=1)


# ------------------------------- main ----------------------------------------
if __name__ == "__main__":
    key = jax.random.PRNGKey(0)
    ks = jax.random.split(key, 16)

    def init_w(k, shape, scale=0.1):
        return scale * jax.random.normal(k, shape, dtype=jnp.float32)

    params = {
        "w_wide": init_w(ks[0], (WIDE_DIM, OUT)),
        "b_wide": init_w(ks[1], (1, OUT)),
        "w_d1":   init_w(ks[2], (DENSE_DIM, H1)),
        "b_d1":   init_w(ks[3], (1, H1)),
        "w_d2":   init_w(ks[4], (H1, DD_OUT)),
        "b_d2":   init_w(ks[5], (1, DD_OUT)),
        "w_h":    init_w(ks[6], (DD_OUT, HEAD_H)),
        "b_h":    init_w(ks[7], (1, HEAD_H)),
        "w_out":  init_w(ks[8], (HEAD_H, OUT)),
        "b_out":  init_w(ks[9], (1, OUT)),
    }

    x_wide = jax.random.normal(ks[10], (B, WIDE_DIM), dtype=jnp.float32)
    x_deep_dense = jax.random.normal(ks[11], (B, DENSE_DIM), dtype=jnp.float32)

    # One-time weight packing (weight-load time, not per forward call).
    param_buf = pack_params(params)

    out = wide_deep_forward_jit(x_wide, x_deep_dense, param_buf)
    out = jax.block_until_ready(out)

    ref = reference_forward(x_wide, x_deep_dense, params)
    assert out.shape == (B, OUT)
    assert jnp.allclose(out, ref, atol=1e-5, rtol=1e-5)
    # exact softmax -> rows sum to 1
    assert jnp.allclose(jnp.sum(out, axis=1), jnp.ones((B,)), atol=1e-5)

    # TODO(synk): deep_text branch (torch.cat path) omitted — deep_text_model is None here.
    print("KERNEL_OK")
</pallas_src>

<mosaic_0001>
module attributes {stable_mosaic.version = 11 : i64} {
  func.func @wide_deep_kernel(%arg0: i32, %arg1: memref<8x16xf32, #tpu.memory_space<vmem>>, %arg2: memref<8x32xf32, #tpu.memory_space<vmem>>, %arg3: memref<160x32xf32, #tpu.memory_space<vmem>>, %arg4: memref<8x2xf32, #tpu.memory_space<vmem>>) attributes {dimension_semantics = [#tpu.dimension_semantics<parallel>], iteration_bounds = array<i64: 1>, scalar_prefetch = 0 : i64, scratch_operands = 0 : i64, tpu.core_type = #tpu.core_type<tc>, window_params = [{transform_indices = @transform_0, window_bounds = array<i64: 8, 16>}, {transform_indices = @transform_1, window_bounds = array<i64: 8, 32>}, {pipeline_mode = #tpu.pipeline_mode<synchronous>, transform_indices = @transform_2, window_bounds = array<i64: 160, 32>}, {transform_indices = @transform_3, window_bounds = array<i64: 8, 2>}]} {
    %c0 = arith.constant 0 : index
    %c0_0 = arith.constant 0 : index
    %0 = vector.load %arg1[%c0, %c0_0] : memref<8x16xf32, #tpu.memory_space<vmem>>, vector<8x16xf32>
    %c0_1 = arith.constant 0 : index
    %c0_2 = arith.constant 0 : index
    %1 = vector.load %arg2[%c0_1, %c0_2] : memref<8x32xf32, #tpu.memory_space<vmem>>, vector<8x32xf32>
    %c0_3 = arith.constant 0 : index
    %c0_4 = arith.constant 0 : index
    %2 = vector.load %arg3[%c0_3, %c0_4] : memref<160x32xf32, #tpu.memory_space<vmem>>, vector<32x32xf32>
    %c32 = arith.constant 32 : index
    %c0_5 = arith.constant 0 : index
    %3 = vector.load %arg3[%c32, %c0_5] : memref<160x32xf32, #tpu.memory_space<vmem>>, vector<1x32xf32>
    %c40 = arith.constant 40 : index
    %c0_6 = arith.constant 0 : index
    %4 = vector.load %arg3[%c40, %c0_6] : memref<160x32xf32, #tpu.memory_space<vmem>>, vector<32x16xf32>
    %c72 = arith.constant 72 : index
    %c0_7 = arith.constant 0 : index
    %5 = vector.load %arg3[%c72, %c0_7] : memref<160x32xf32, #tpu.memory_space<vmem>>, vector<1x16xf32>
    %c80 = arith.constant 80 : index
    %c0_8 = arith.constant 0 : index
    %6 = vector.load %arg3[%c80, %c0_8] : memref<160x32xf32, #tpu.memory_space<vmem>>, vector<16x32xf32>
    %c96 = arith.constant 96 : index
    %c0_9 = arith.constant 0 : index
    %7 = vector.load %arg3[%c96, %c0_9] : memref<160x32xf32, #tpu.memory_space<vmem>>, vector<1x32xf32>
    %c104 = arith.constant 104 : index
    %c0_10 = arith.constant 0 : index
    %8 = vector.load %arg3[%c104, %c0_10] : memref<160x32xf32, #tpu.memory_space<vmem>>, vector<16x2xf32>
    %c120 = arith.constant 120 : index
    %c0_11 = arith.constant 0 : index
    %9 = vector.load %arg3[%c120, %c0_11] : memref<160x32xf32, #tpu.memory_space<vmem>>, vector<32x2xf32>
    %c152 = arith.constant 152 : index
    %c0_12 = arith.constant 0 : index
    %10 = vector.load %arg3[%c152, %c0_12] : memref<160x32xf32, #tpu.memory_space<vmem>>, vector<1x2xf32>
    %cst = arith.constant dense<0.000000e+00> : vector<8x32xf32>
    %11 = tpu.matmul %1, %2, %cst {dimension_numbers = #tpu.dot_dimension_numbers<[1], [0], [0], [1], [0, 0, 1, 1], [], []>} : vector<8x32xf32>, vector<32x32xf32>, vector<8x32xf32> -> vector<8x32xf32>
    %12 = vector.broadcast %3 : vector<1x32xf32> to vector<8x32xf32>
    %13 = arith.addf %11, %12 : vector<8x32xf32>
    %cst_13 = arith.constant 0.000000e+00 : f32
    %14 = vector.broadcast %cst_13 : f32 to vector<8x32xf32>
    %15 = arith.cmpf ogt, %13, %14 : vector<8x32xf32>
    %cst_14 = arith.constant 0.00999999977 : f32
    %16 = vector.broadcast %cst_14 : f32 to vector<8x32xf32>
    %17 = arith.mulf %16, %13 : vector<8x32xf32>
    %18 = arith.select %15, %13, %17 : vector<8x32xi1>, vector<8x32xf32>
    %cst_15 = arith.constant dense<0.000000e+00> : vector<8x16xf32>
    %19 = tpu.matmul %18, %4, %cst_15 {dimension_numbers = #tpu.dot_dimension_numbers<[1], [0], [0], [1], [0, 0, 1, 1], [], []>} : vector<8x32xf32>, vector<32x16xf32>, vector<8x16xf32> -> vector<8x16xf32>
    %20 = vector.broadcast %5 : vector<1x16xf32> to vector<8x16xf32>
    %21 = arith.addf %19, %20 : vector<8x16xf32>
    %cst_16 = arith.constant 0.000000e+00 : f32
    %22 = vector.broadcast %cst_16 : f32 to vector<8x16xf32>
    %23 = arith.cmpf ogt, %21, %22 : vector<8x16xf32>
    %cst_17 = arith.constant 0.00999999977 : f32
    %24 = vector.broadcast %cst_17 : f32 to vector<8x16xf32>
    %25 = arith.mulf %24, %21 : vector<8x16xf32>
    %26 = arith.select %23, %21, %25 : vector<8x16xi1>, vector<8x16xf32>
    %cst_18 = arith.constant dense<0.000000e+00> : vector<8x32xf32>
    %27 = tpu.matmul %26, %6, %cst_18 {dimension_numbers = #tpu.dot_dimension_numbers<[1], [0], [0], [1], [0, 0, 1, 1], [], []>} : vector<8x16xf32>, vector<16x32xf32>, vector<8x32xf32> -> vector<8x32xf32>
    %28 = vector.broadcast %7 : vector<1x32xf32> to vector<8x32xf32>
    %29 = arith.addf %27, %28 : vector<8x32xf32>
    %cst_19 = arith.constant 0.000000e+00 : f32
    %30 = vector.broadcast %cst_19 : f32 to vector<8x32xf32>
    %31 = arith.cmpf ogt, %29, %30 : vector<8x32xf32>
    %cst_20 = arith.constant 0.00999999977 : f32
    %32 = vector.broadcast %cst_20 : f32 to vector<8x32xf32>
    %33 = arith.mulf %32, %29 : vector<8x32xf32>
    %34 = arith.select %31, %29, %33 : vector<8x32xi1>, vector<8x32xf32>
    %cst_21 = arith.constant dense<0.000000e+00> : vector<8x2xf32>
    %35 = tpu.matmul %0, %8, %cst_21 {dimension_numbers = #tpu.dot_dimension_numbers<[1], [0], [0], [1], [0, 0, 1, 1], [], []>} : vector<8x16xf32>, vector<16x2xf32>, vector<8x2xf32> -> vector<8x2xf32>
    %cst_22 = arith.constant dense<0.000000e+00> : vector<8x2xf32>
    %36 = tpu.matmul %34, %9, %cst_22 {dimension_numbers = #tpu.dot_dimension_numbers<[1], [0], [0], [1], [0, 0, 1, 1], [], []>} : vector<8x32xf32>, vector<32x2xf32>, vector<8x2xf32> -> vector<8x2xf32>
    %37 = arith.addf %35, %36 : vector<8x2xf32>
    %38 = vector.broadcast %10 : vector<1x2xf32> to vector<8x2xf32>
    %39 = arith.addf %37, %38 : vector<8x2xf32>
    %cst_23 = arith.constant dense<0xFF800000> : vector<8xf32>
    %40 = vector.multi_reduction <maximumf>, %39, %cst_23 [1] : vector<8x2xf32> to vector<8xf32>
    %41 = vector.shape_cast %40 : vector<8xf32> to vector<8x1xf32>
    %42 = vector.broadcast %41 : vector<8x1xf32> to vector<8x2xf32>
    %43 = arith.subf %39, %42 : vector<8x2xf32>
    %44 = math.exp %43 : vector<8x2xf32>
    %cst_24 = arith.constant dense<0.000000e+00> : vector<8xf32>
    %45 = vector.multi_reduction <add>, %44, %cst_24 [1] : vector<8x2xf32> to vector<8xf32>
    %46 = vector.shape_cast %45 : vector<8xf32> to vector<8x1xf32>
    %47 = vector.broadcast %46 : vector<8x1xf32> to vector<8x2xf32>
    %48 = arith.divf %44, %47 : vector<8x2xf32>
    %c0_25 = arith.constant 0 : index
    %c0_26 = arith.constant 0 : index
    %49 = vector.load %arg4[%c0_25, %c0_26] : memref<8x2xf32, #tpu.memory_space<vmem>>, vector<8x2xf32>
    tpu.vector_store %arg4[%c0_25, %c0_26], %48 {strides = array<i32>} : memref<8x2xf32, #tpu.memory_space<vmem>>, vector<8x2xf32>,
    return
  }
  func.func @transform_0(%arg0: i32) -> (i32, i32) {
    %c0_i32 = arith.constant 0 : i32
    %c0_i32_0 = arith.constant 0 : i32
    return %arg0, %c0_i32 : i32, i32
  }
  func.func @transform_1(%arg0: i32) -> (i32, i32) {
    %c0_i32 = arith.constant 0 : i32
    %c0_i32_0 = arith.constant 0 : i32
    return %arg0, %c0_i32 : i32, i32
  }
  func.func @transform_2(%arg0: i32) -> (i32, i32) {
    %c0_i32 = arith.constant 0 : i32
    %c0_i32_0 = arith.constant 0 : i32
    %c0_i32_1 = arith.constant 0 : i32
    return %c0_i32, %c0_i32_0 : i32, i32
  }
  func.func @transform_3(%arg0: i32) -> (i32, i32) {
    %c0_i32 = arith.constant 0 : i32
    %c0_i32_0 = arith.constant 0 : i32
    return %arg0, %c0_i32 : i32, i32
  }
}

</mosaic_0001>

<llo_original>
// kernel: wide_deep_forward.1
$region0: #{wide_deep_forward.1}
  #allocation0 [shape = 'u32[]', space=smem, size = 0x4, offset = 0x4, fixed_abs, tag = 'smem constant byte address 0x4 - core index']
  #allocation1 [shape = 'u32[72,128]{1,0:T(1,128)}', space=vmem, size = 0x9000, scoped, tag = 'internal scratch']
  %s0 = inlined_call_operand.vmem [shape: f32[8,16], index: 0, kind: input, shape index: {}]
  %s1 = inlined_call_operand.vmem [shape: f32[8,32], index: 1, kind: input, shape index: {}]
  %s2 = inlined_call_operand.vmem [shape: f32[160,32], index: 2, kind: input, shape index: {}]
  %s3 = inlined_call_operand.vmem [shape: f32[8,2], index: 3, kind: output, shape index: {}]
  %s4 = sld [smem:[#allocation0]]
  $region22: #{wide_deep_forward.1} parent=0
    _
  %s6 = ssub.s32 1, %s4
  %s7 = scalar_select 0, %s6, %s4
  // Predicated region
  $region2: #{wide_deep_forward.1} parent=0 // pred_check
    _
  $region3: #{wide_deep_forward.1} parent=0 // pred_check_branch
    %9 = sbr.rel (0) target = $region5
  $region4: #{wide_deep_forward.1} parent=0 // pred_region
    _
  $region5: #{wide_deep_forward.1} parent=0 // pred_fallthru
    _
  // Predicated region
  $region6: #{wide_deep_forward.1} parent=0 // pred_check
    _
  $region7: #{wide_deep_forward.1} parent=0 // pred_check_branch
    %11 = sbr.rel (0) target = $region9
  $region8: #{wide_deep_forward.1} parent=0 // pred_region
    _
  $region9: #{wide_deep_forward.1} parent=0 // pred_fallthru
    _
  // Predicated region
  $region10: #{wide_deep_forward.1} parent=0 // pred_check
    _
  $region11: #{wide_deep_forward.1} parent=0 // pred_check_branch
    %13 = sbr.rel (0) target = $region13
  $region12: #{wide_deep_forward.1} parent=0 // pred_region
    _
  $region13: #{wide_deep_forward.1} parent=0 // pred_fallthru
    _
  %v14 = vld [vmem:[%s0] sm:$0xff]
  %v15 = vld [vmem:[%s1] sm:$0xff]
  %v16 = vld [vmem:[%s2] sm:$0xff]
  %v17 = vld [vmem:[%s2 + $0x8] sm:$0xff]
  %v18 = vld [vmem:[%s2 + $0x10] sm:$0xff]
  %v19 = vld [vmem:[%s2 + $0x18] sm:$0xff]
  %v20 = vld [vmem:[%s2 + $0x20] sm:$0x1]
  %v21 = vld [vmem:[%s2 + $0x28] sm:$0xff]
  %v22 = vld [vmem:[%s2 + $0x30] sm:$0xff]
  %v23 = vld [vmem:[%s2 + $0x38] sm:$0xff]
  %v24 = vld [vmem:[%s2 + $0x40] sm:$0xff]
  %v25 = vld [vmem:[%s2 + $0x48] sm:$0x1]
  %v26 = vld [vmem:[%s2 + $0x50] sm:$0xff]
  %v27 = vld [vmem:[%s2 + $0x58] sm:$0xff]
  %v28 = vld [vmem:[%s2 + $0x60] sm:$0x1]
  %v29 = vld [vmem:[%s2 + $0x68] sm:$0xff]
  %v30 = vld [vmem:[%s2 + $0x70] sm:$0xff]
  %v31 = vld [vmem:[%s2 + $0x78] sm:$0xff]
  %v32 = vld [vmem:[%s2 + $0x80] sm:$0xff]
  %v33 = vld [vmem:[%s2 + $0x88] sm:$0xff]
  %v34 = vld [vmem:[%s2 + $0x90] sm:$0xff]
  %v35 = vld [vmem:[%s2 + $0x98] sm:$0x1]
  %v36 = vperm.slane %v20, 0
  %vm37 = vcmask 261120
  %v39 = vsel %vm37, %v15, 0
  %41 = vmatpush.msra.mxu0 0.0
  %42 = vmatpush.msra.mxu0 0.0
  %43 = vmatpush.msra.mxu0 0.0
  %44 = vmatpush.msra.mxu0 0.0
  %45 = vmatpush.msra.mxu0 0.0
  %46 = vmatpush.msra.mxu0 0.0
  %47 = vmatpush.msra.mxu0 0.0
  %48 = vmatpush.msra.mxu0 0.0
  %49 = vmatpush.msra.mxu0 0.0
  %50 = vmatpush.msra.mxu0 0.0
  %51 = vmatpush.msra.mxu0 0.0
  %52 = vmatpush.msra.mxu0 0.0
  %53 = vmatpush.msra.mxu0 %v19
  %54 = vmatpush.msra.mxu0 %v18
  %55 = vmatpush.msra.mxu0 %v17
  %56 = vmatpush.msra.mxu0 %v16
  %57 = vmatmul.f32.gmra.mxu0 %v39
  %v58 = vpop.f32.mrf.mxu0
  %v59 = vadd.f32 %v36, %v58
  %60 = vdwg.mxu0
  %vm61 = vcmp.gt.f32.partialorder %v59, 0.0
  %v62 = vmul.f32 %v59, 0.01
  %v63 = vsel %vm61, %v59, %v62
  %v64 = vperm.slane %v25, 0
  %v66 = vsel %vm37, %v63, 0
  %68 = vmatpush.msra.mxu0 0.0
  %69 = vmatpush.msra.mxu0 0.0
  %70 = vmatpush.msra.mxu0 0.0
  %71 = vmatpush.msra.mxu0 0.0
  %72 = vmatpush.msra.mxu0 0.0
  %73 = vmatpush.msra.mxu0 0.0
  %74 = vmatpush.msra.mxu0 0.0
  %75 = vmatpush.msra.mxu0 0.0
  %76 = vmatpush.msra.mxu0 0.0
  %77 = vmatpush.msra.mxu0 0.0
  %78 = vmatpush.msra.mxu0 0.0
  %79 = vmatpush.msra.mxu0 0.0
  %80 = vmatpush.msra.mxu0 %v24
  %81 = vmatpush.msra.mxu0 %v23
  %82 = vmatpush.msra.mxu0 %v22
  %83 = vmatpush.msra.mxu0 %v21
  %84 = vmatmul.f32.gmra.mxu0 %v66
  %v85 = vpop.f32.mrf.mxu0
  %v86 = vadd.f32 %v64, %v85
  %87 = vdwg.mxu0
  %vm88 = vcmp.gt.f32.partialorder %v86, 0.0
  %v89 = vmul.f32 %v86, 0.01
  %v90 = vsel %vm88, %v86, %v89
  %v91 = vperm.slane %v28, 0
  %vm92 = vcmask 130048
  %v94 = vsel %vm92, %v90, 0
  %96 = vmatpush.msra.mxu0 0.0
  %97 = vmatpush.msra.mxu0 0.0
  %98 = vmatpush.msra.mxu0 0.0
  %99 = vmatpush.msra.mxu0 0.0
  %100 = vmatpush.msra.mxu0 0.0
  %101 = vmatpush.msra.mxu0 0.0
  %102 = vmatpush.msra.mxu0 0.0
  %103 = vmatpush.msra.mxu0 0.0
  %104 = vmatpush.msra.mxu0 0.0
  %105 = vmatpush.msra.mxu0 0.0
  %106 = vmatpush.msra.mxu0 0.0
  %107 = vmatpush.msra.mxu0 0.0
  %108 = vmatpush.msra.mxu0 0.0
  %109 = vmatpush.msra.mxu0 0.0
  %110 = vmatpush.msra.mxu0 %v27
  %111 = vmatpush.msra.mxu0 %v26
  %112 = vmatmul.f32.gmra.mxu0 %v94
  %v113 = vpop.f32.mrf.mxu0
  %v114 = vadd.f32 %v91, %v113
  %115 = vdwg.mxu0
  %vm116 = vcmp.gt.f32.partialorder %v114, 0.0
  %v117 = vmul.f32 %v114, 0.01
  %v118 = vsel %vm116, %v114, %v117
  %v120 = vsel %vm37, %v118, 0
  %122 = vmatpush.msra.mxu0 0.0
  %123 = vmatpush.msra.mxu0 0.0
  %124 = vmatpush.msra.mxu0 0.0
  %125 = vmatpush.msra.mxu0 0.0
  %126 = vmatpush.msra.mxu0 0.0
  %127 = vmatpush.msra.mxu0 0.0
  %128 = vmatpush.msra.mxu0 0.0
  %129 = vmatpush.msra.mxu0 0.0
  %130 = vmatpush.msra.mxu0 0.0
  %131 = vmatpush.msra.mxu0 0.0
  %132 = vmatpush.msra.mxu0 0.0
  %133 = vmatpush.msra.mxu0 0.0
  %134 = vmatpush.msra.mxu0 %v34
  %135 = vmatpush.msra.mxu0 %v33
  %136 = vmatpush.msra.mxu0 %v32
  %137 = vmatpush.msra.mxu0 %v31
  %138 = vmatmul.f32.gmra.mxu0 %v120
  %v139 = vpop.f32.mrf.mxu0
  %v140 = vadd.f32 0.0, %v139
  %141 = vdwg.mxu0
  %v143 = vsel %vm92, %v14, 0
  %145 = vmatpush.msra.mxu0 0.0
  %146 = vmatpush.msra.mxu0 0.0
  %147 = vmatpush.msra.mxu0 0.0
  %148 = vmatpush.msra.mxu0 0.0
  %149 = vmatpush.msra.mxu0 0.0
  %150 = vmatpush.msra.mxu0 0.0
  %151 = vmatpush.msra.mxu0 0.0
  %152 = vmatpush.msra.mxu0 0.0
  %153 = vmatpush.msra.mxu0 0.0
  %154 = vmatpush.msra.mxu0 0.0
  %155 = vmatpush.msra.mxu0 0.0
  %156 = vmatpush.msra.mxu0 0.0
  %157 = vmatpush.msra.mxu0 0.0
  %158 = vmatpush.msra.mxu0 0.0
  %159 = vmatpush.msra.mxu0 %v30
  %160 = vmatpush.msra.mxu0 %v29
  %161 = vmatmul.f32.gmra.mxu0 %v143
  %v162 = vpop.f32.mrf.mxu0
  %v163 = vadd.f32 %v140, %v162
  %164 = vdwg.mxu0
  %v165 = vperm.slane %v35, 0
  %v166 = vadd.f32 %v163, %v165
  %vm167 = vcmask 15360
  %v168 = vsel %vm167, %v166, -inf
  %169 = vmax.xlane.f32.xlu0 %v168
  %v170 = vpop.xlane.xlu0 %169
  %v171 = vsub.f32 %v166, %v170
  %v172 = vmul.f32 %v171, 1.442695
  %v173 = vpow.pop %v172
  %v174 = vsel %vm167, %v173, 0.0
  %175 = vadd.xlane.f32.xlu0 %v174
  %v176 = vpop.xlane.xlu0 %175
  %v177 = vrcp.pop %v176
  %v178 = vmul.f32 %v176, %v177
  %v179 = vsub.f32 1.0, %v178
  %v180 = vmul.f32 %v177, %v179
  %v181 = vadd.f32 %v177, %v180
  %vm182 = vweird.f32 %v176
  %vm183 = vweird.f32 %v177
  %vm184 = vmor %vm182, %vm183
  %v185 = vsel %vm184, %v177, %v181
  %v186 = vand.u32 2147483647, %v176
  %vm187 = vcmp.eq.f32.partialorder %v186, 8.507059e+37
  %v188 = vand.u32 %v176, 2147483648
  %v189 = vor.u32 1.1754944e-38, %v188
  %v190 = vsel %vm187, %v189, %v185
  %v191 = vmul.f32 %v173, %v190
  %192 = vst.msk [vmem:[%s3] sm:$0xff] %vm167, %v191
  // Predicated region
  $region14: #{wide_deep_forward.1} parent=0 // pred_check
    _
  $region15: #{wide_deep_forward.1} parent=0 // pred_check_branch
    %194 = sbr.rel (0) target = $region17
  $region16: #{wide_deep_forward.1} parent=0 // pred_region
    _
  $region17: #{wide_deep_forward.1} parent=0 // pred_fallthru
    _
  // Predicated region
  $region18: #{wide_deep_forward.1} parent=0 // pred_check
    _
  $region19: #{wide_deep_forward.1} parent=0 // pred_check_branch
    %196 = sbr.rel (0) target = $region21
  $region20: #{wide_deep_forward.1} parent=0 // pred_region
    _
  $region21: #{wide_deep_forward.1} parent=0 // pred_fallthru
    _

</llo_original>
